<compile_context>
chip_gen: v7x
topology: tpu7x:2x2x1
jax: 0.10.0
libtpu: 0.0.40
codegen_flags: <defaults>
</compile_context>

<pallas_src>
import math
import functools

import jax
import jax.numpy as jnp
from jax.experimental import pallas as pl
from jax.experimental.pallas import tpu as pltpu


# --------------------------------- kernels ----------------------------------

def _mask_apply_kernel(x_ref, m_ref, o_ref, *, lo, n):
    # x_ref: (TM, D) row tile, m_ref: (1, n) precomputed window mask (x.dtype),
    # o_ref: (TM, n).  Static window slice fused on the VMEM ref (no separate
    # XLA slice pass over HBM); single fused multiply + store.
    o_ref[...] = (x_ref[:, lo:lo + n] * m_ref[...]).astype(o_ref.dtype)


def _layernorm_mask_kernel(x_ref, g_ref, b_ref, m_ref, o_ref, *, lo, n, d, ln_eps):
    # Fused CNNNet input stage: torch LayerNorm (unbiased std, eps on std)
    # followed by the gaussian window mask; reads (TM, D) once, writes (TM, n).
    x = x_ref[...].astype(jnp.float32)
    mean = jnp.mean(x, axis=-1, keepdims=True)
    xc = x - mean
    var = jnp.sum(xc * xc, axis=-1, keepdims=True) * (1.0 / (d - 1))
    std = jnp.sqrt(var)
    y = (g_ref[...] * xc) / (std + ln_eps) + b_ref[...]
    o_ref[...] = (y[:, lo:lo + n] * m_ref[...]).astype(o_ref.dtype)


# --------------------------------- tiling -----------------------------------

def _pick_block_rows(rows, bytes_per_row, itemsize, *, min_blocks=8,
                     budget=12 * 1024 * 1024):
    """Rows per grid step:
      * aligned to the dtype's native sublane packing (8 f32 / 16 bf16 / 32 i8),
      * double-buffered in+out tiles stay well under the default scoped-VMEM
        limit on every generation (v5e 16 MiB scoped, v7x 64 MiB physical),
      * >= min_blocks grid steps when rows allow it, so the 'parallel' row
        axis splits across v7x's two TensorCores and the pipeline overlaps.
    """
    align = 8 * max(1, 4 // max(1, itemsize))
    tm_mem = max(align, budget // max(1, 2 * bytes_per_row))
    tm_par = max(align, rows // min_blocks)
    tm = min(tm_mem, tm_par, 1024, rows)
    if tm >= rows:
        return rows                         # single full block (always legal)
    return max(align, (tm // align) * align)


# ------------------------------ Masking module -------------------------------

class MaskingPallas:
    """Pallas port of Masking(dim, mask='gaussian', hard=...), forward only."""
    # TODO(synk): only the 'gaussian' branch is ported (no hamming/hann/tukey/
    # rectangle), and r_masking / the window bounds are baked in at trace time,
    # so no gradient flows through r_masking (inference parity only).

    def __init__(self, dim, mask='gaussian', hard=False, r_masking=1.0,
                 block_rows=None):
        assert mask == 'gaussian'
        self.mask = mask
        self.hard_mask = hard
        self.input_dim = dim
        self.epsilon = 1e-12
        self.block_rows = block_rows
        # deterministic parameter init (mirrors nn.Module.__init__)
        self.w_space = jnp.linspace(-dim // 2 + 1, dim // 2 + 1, dim,
                                    dtype=jnp.float32)
        self.factor = float(dim // 4 / math.sqrt(-math.log(self.epsilon) / 0.5))
        self.r_masking = float(r_masking)      # nn.Parameter(torch.tensor([1.]))

    def window_bounds(self):
        r_mask = int(math.sqrt(-math.log(self.epsilon) / 0.5)
                     * self.r_masking * self.factor * 2)
        lo = (self.input_dim - r_mask) // 2
        hi = (self.input_dim + r_mask) // 2
        return lo, hi

    def window_mask(self, dtype):
        # Computed once outside the kernel with exactly the torch math, so the
        # hard-mask threshold decision at the window edges matches torch.
        lo, hi = self.window_bounds()
        m = jnp.exp(-0.5 * (self.w_space / (self.factor * self.r_masking)) ** 2)
        m = m[lo:hi]
        if self.hard_mask:
            eps = self.epsilon
            m = jnp.where(m > eps, (m + eps) / (m + eps), 0.0 / (m + eps))
        return m.astype(dtype).reshape(1, hi - lo)

    def __call__(self, x):
        B, C, D = x.shape
        assert D == self.input_dim
        lo, hi = self.window_bounds()
        n = hi - lo
        assert 0 <= lo and lo + n <= D and n > 0, (lo, hi, D)

        rows = B * C
        x_flat = x.reshape(rows, D)                     # free view, no copy
        mask = self.window_mask(x.dtype)                # (1, n) resident block

        itemsize = jnp.dtype(x.dtype).itemsize
        tm = self.block_rows or _pick_block_rows(rows, (D + n) * itemsize, itemsize)
        tm = min(tm, rows)
        grid = (pl.cdiv(rows, tm),)

        kernel = functools.partial(_mask_apply_kernel, lo=lo, n=n)
        out = pl.pallas_call(
            kernel,
            grid=grid,
            in_specs=[
                pl.BlockSpec((tm, D), lambda i: (i, 0)),   # x row tile
                pl.BlockSpec((1, n), lambda i: (0, 0)),    # resident mask
            ],
            out_specs=pl.BlockSpec((tm, n), lambda i: (i, 0)),
            out_shape=jax.ShapeDtypeStruct((rows, n), x.dtype),
            compiler_params=pltpu.CompilerParams(
                dimension_semantics=("parallel",)),
            cost_estimate=pl.CostEstimate(
                flops=rows * n,
                transcendentals=0,
                bytes_accessed=(rows * D + rows * n + n) * itemsize),
        )(x_flat, mask)
        return out.reshape(B, C, n)


# -------------------- fused CNNNet input stage (ln0 + mask) ------------------

class InputLayerNormMaskingPallas:
    """Fused ln0 + gaussian Masking, i.e. the CNNNet / CNN_CNN_CNN input stage
    with cnn_use_laynorm_inp=True:

        x = LayerNorm(dim)(x)             # gamma*(x-mean)/(std+eps)+beta
        x = x.view(batch, 1, dim)
        x = Masking(dim, 'gaussian', hard_mask)(x)

    One HBM read of x, one HBM write of the window -> the standalone masking
    pass (full write + re-read) is eliminated.
    """
    # TODO(synk): the three Conv1d+maxpool+LayerNorm CNN stages and the MLP/
    # softmax head of CNNNet are not ported; the next step is fusing this mask
    # into the first conv's input pipeline once that conv is a Pallas kernel.

    def __init__(self, dim, hard=True, r_masking=1.0, ln_eps=1e-6,
                 block_rows=None):
        assert dim > 1
        self.dim = dim
        self.ln_eps = float(ln_eps)
        self.block_rows = block_rows
        self.masking = MaskingPallas(dim, 'gaussian', hard, r_masking)
        self.gamma = jnp.ones((dim,), jnp.float32)      # LayerNorm params
        self.beta = jnp.zeros((dim,), jnp.float32)

    def __call__(self, x):
        batch, D = x.shape
        assert D == self.dim
        lo, hi = self.masking.window_bounds()
        n = hi - lo
        mask = self.masking.window_mask(jnp.float32)    # applied to f32 LN out

        itemsize = jnp.dtype(x.dtype).itemsize
        tm = self.block_rows or _pick_block_rows(batch, (D + n) * itemsize, itemsize)
        tm = min(tm, batch)
        grid = (pl.cdiv(batch, tm),)

        kernel = functools.partial(_layernorm_mask_kernel,
                                   lo=lo, n=n, d=D, ln_eps=self.ln_eps)
        out = pl.pallas_call(
            kernel,
            grid=grid,
            in_specs=[
                pl.BlockSpec((tm, D), lambda i: (i, 0)),   # x row tile
                pl.BlockSpec((1, D), lambda i: (0, 0)),    # gamma (resident)
                pl.BlockSpec((1, D), lambda i: (0, 0)),    # beta  (resident)
                pl.BlockSpec((1, n), lambda i: (0, 0)),    # mask  (resident)
            ],
            out_specs=pl.BlockSpec((tm, n), lambda i: (i, 0)),
            out_shape=jax.ShapeDtypeStruct((batch, n), x.dtype),
            compiler_params=pltpu.CompilerParams(
                dimension_semantics=("parallel",)),
            cost_estimate=pl.CostEstimate(
                flops=batch * D * 8,
                transcendentals=batch,
                bytes_accessed=(batch * (D + n) + 2 * D + n) * itemsize),
        )(x, self.gamma.reshape(1, D), self.beta.reshape(1, D), mask)
        return out.reshape(batch, 1, n)


# ----------------------------------- demo ------------------------------------

if __name__ == "__main__":
    # --- standalone Masking (module parity), small (B, C, dim) ---
    B, C, dim = 2, 16, 32
    x3 = jax.random.normal(jax.random.PRNGKey(0), (B, C, dim), dtype=jnp.float32)

    for hard in (False, True):          # CNNNet uses hard_mask=True
        # block_rows=8 forces a 4-step grid so the tiled/pipelined path is
        # exercised even at this tiny demo size (rows = B*C = 32).
        mod = MaskingPallas(dim, 'gaussian', hard, block_rows=8)
        y = jax.block_until_ready(mod(x3))

        # pure-JAX reference mirroring the torch forward literally
        eps = mod.epsilon
        m = jnp.exp(-0.5 * (mod.w_space / (mod.factor * mod.r_masking)) ** 2)
        r_mask = int(math.sqrt(-math.log(eps) / 0.5) * mod.r_masking * mod.factor * 2)
        lo, hi = (dim - r_mask) // 2, (dim + r_mask) // 2
        m = m[lo:hi]
        if hard:
            m = jnp.where(m > eps, (m + eps) / (m + eps), 0.0 / (m + eps))
        ref = x3[:, :, lo:hi] * m
        assert y.shape == ref.shape, (y.shape, ref.shape)
        assert jnp.allclose(y, ref, atol=1e-6, rtol=1e-6), \
            float(jnp.max(jnp.abs(y - ref)))

    # --- fused input-LayerNorm + Masking (CNNNet input stage), (batch, wlen) ---
    batch, wlen = 32, 64
    k1, k2, k3 = jax.random.split(jax.random.PRNGKey(1), 3)
    x2 = jax.random.normal(k1, (batch, wlen), dtype=jnp.float32)
    fused = InputLayerNormMaskingPallas(wlen, hard=True, block_rows=8)
    # non-trivial gamma/beta so the affine part is actually exercised
    fused.gamma = 1.0 + 0.1 * jax.random.normal(k2, (wlen,), jnp.float32)
    fused.beta = 0.1 * jax.random.normal(k3, (wlen,), jnp.float32)
    y2 = jax.block_until_ready(fused(x2))

    # pure-JAX reference: torch LayerNorm (unbiased std) -> view -> gaussian mask
    mean = jnp.mean(x2, axis=-1, keepdims=True)
    std = jnp.std(x2, axis=-1, keepdims=True, ddof=1)
    ln = fused.gamma * (x2 - mean) / (std + fused.ln_eps) + fused.beta
    mm = fused.masking
    m = jnp.exp(-0.5 * (mm.w_space / (mm.factor * mm.r_masking)) ** 2)
    r_mask = int(math.sqrt(-math.log(mm.epsilon) / 0.5) * mm.r_masking * mm.factor * 2)
    lo, hi = (wlen - r_mask) // 2, (wlen + r_mask) // 2
    m = m[lo:hi]
    m = jnp.where(m > mm.epsilon, (m + mm.epsilon) / (m + mm.epsilon),
                  0.0 / (m + mm.epsilon))
    ref2 = ln[:, None, lo:hi] * m
    assert y2.shape == ref2.shape, (y2.shape, ref2.shape)
    assert jnp.allclose(y2, ref2, atol=1e-5, rtol=1e-5), \
        float(jnp.max(jnp.abs(y2 - ref2)))

    print("KERNEL_OK")
</pallas_src>

<mosaic_0001>
module attributes {stable_mosaic.version = 11 : i64} {
  func.func @_mask_apply_kernel(%arg0: i32, %arg1: memref<8x32xf32, #tpu.memory_space<vmem>>, %arg2: memref<1x16xf32, #tpu.memory_space<vmem>>, %arg3: memref<8x16xf32, #tpu.memory_space<vmem>>) attributes {dimension_semantics = [#tpu.dimension_semantics<parallel>], iteration_bounds = array<i64: 4>, scalar_prefetch = 0 : i64, scratch_operands = 0 : i64, tpu.core_type = #tpu.core_type<tc>, window_params = [{transform_indices = @transform_0, window_bounds = array<i64: 8, 32>}, {pipeline_mode = #tpu.pipeline_mode<synchronous>, transform_indices = @transform_1, window_bounds = array<i64: 1, 16>}, {transform_indices = @transform_2, window_bounds = array<i64: 8, 16>}]} {
    %c0 = arith.constant 0 : index
    %c8 = arith.constant 8 : index
    %0 = vector.load %arg1[%c0, %c8] : memref<8x32xf32, #tpu.memory_space<vmem>>, vector<8x16xf32>
    %c0_0 = arith.constant 0 : index
    %c0_1 = arith.constant 0 : index
    %1 = vector.load %arg2[%c0_0, %c0_1] : memref<1x16xf32, #tpu.memory_space<vmem>>, vector<1x16xf32>
    %2 = vector.broadcast %1 : vector<1x16xf32> to vector<8x16xf32>
    %3 = arith.mulf %0, %2 : vector<8x16xf32>
    %c0_2 = arith.constant 0 : index
    %c0_3 = arith.constant 0 : index
    %4 = vector.load %arg3[%c0_2, %c0_3] : memref<8x16xf32, #tpu.memory_space<vmem>>, vector<8x16xf32>
    tpu.vector_store %arg3[%c0_2, %c0_3], %3 {strides = array<i32>} : memref<8x16xf32, #tpu.memory_space<vmem>>, vector<8x16xf32>,
    return
  }
  func.func @transform_0(%arg0: i32) -> (i32, i32) {
    %c0_i32 = arith.constant 0 : i32
    %c0_i32_0 = arith.constant 0 : i32
    return %arg0, %c0_i32 : i32, i32
  }
  func.func @transform_1(%arg0: i32) -> (i32, i32) {
    %c0_i32 = arith.constant 0 : i32
    %c0_i32_0 = arith.constant 0 : i32
    %c0_i32_1 = arith.constant 0 : i32
    return %c0_i32, %c0_i32_0 : i32, i32
  }
  func.func @transform_2(%arg0: i32) -> (i32, i32) {
    %c0_i32 = arith.constant 0 : i32
    %c0_i32_0 = arith.constant 0 : i32
    return %arg0, %c0_i32 : i32, i32
  }
}

</mosaic_0001>

<llo_original>
// kernel: tpu_custom_call.1
$region0: #{tpu_custom_call.1}
  #allocation0 [shape = 'u32[]', space=smem, size = 0x4, offset = 0x4, fixed_abs, tag = 'smem constant byte address 0x4 - core index']
  #allocation1 [shape = 'u32[144,128]{1,0:T(1,128)}', space=vmem, size = 0x12000, scoped, tag = 'internal scratch']
  %s0 = inlined_call_operand.hbm [shape: f32[32,32], index: 0, kind: input, shape index: {}]
  %s1 = inlined_call_operand.vmem [shape: f32[1,16], index: 1, kind: input, shape index: {}]
  %s2 = inlined_call_operand.vmem [shape: f32[32,16], index: 2, kind: output, shape index: {}]
  %s3 = sld [smem:[#allocation0]]
  $region45: #{tpu_custom_call.1} parent=0
    _
  %s5 = ssub.s32 1, %s3
  %s6 = scalar_select 0, %s5, %s3
  $region1: #{tpu_custom_call.1} parent=0
    #allocation2 [shape = 'u8[8192]{0}', space=vmem, size = 0x2000, scoped, tag = 'input window, operand 0']
    #allocation3 [shape = 's32[2]{0}', space=sflag, size = 0x8, scoped, tag = 'scoped memory for tpu_custom_call.1']
    %7 = vsyncpa [#allocation3], 0
    %s8 = scalar_lea.sflag [#allocation3], 1
    %9 = vsyncpa %s8, 0
    loop: start=0, step=1, limit=6
    $region2: #{tpu_custom_call.1} parent=1 // loop_pre_header
      _
    $region3: #{tpu_custom_call.1} parent=1 // loop_header
      %s11 = sphi 0, %s15
      %p12 = scmp.ge.s32.totalorder %s11, 6
      %s21 = sphi 0, %s23
      %s24 = sphi 0, %s21
      %s25 = sphi 0, %s24
      %s41 = sphi 0, %s25
      %s45 = sphi 0, %s45
      %s47 = sphi 0, %s45
      %s48 = sphi 0, %s47
      %s62 = sphi 0, %s48
      %s68 = sphi 0, %s70
      %s71 = sphi 0, %s68
      %s72 = sphi 0, %s71
      %s88 = sphi 0, %s72
    $region4: #{tpu_custom_call.1} parent=1 // loop_header_branch
      %14 = sbr.rel (%p12) target = $region8
    $region5: #{tpu_custom_call.1} parent=1 // loop_body
      %s16 = ssub.s32 %s11, 1
      %s17 = ssub.s32 %s11, 2
      %s18 = sadd.s32 %s11, 1
      %s19 = ssub.s32 %s11, %s18
      %p20 = scmp.eq.s32.totalorder %s19, 0
      %s22 = sadd.s32 %s21, 1
      %s23 = scalar_select %p20, %s21, %s22
      %p26 = pneg %p20
      %p27 = scmp.eq.s32.totalorder %s11, 3
      %p28 = por %p26, %p27
      %p29 = scmp.ne.s32.totalorder %s21, %s24
      %p30 = scmp.eq.s32.totalorder %s11, 0
      %p31 = por %p29, %p30
      %p32 = scmp.ne.s32.totalorder %s21, %s24
      %p33 = scmp.eq.s32.totalorder %s16, 3
      %p34 = por %p32, %p33
      %p35 = scmp.ne.s32.totalorder %s24, %s25
      %p36 = scmp.eq.s32.totalorder %s16, 0
      %p37 = por %p35, %p36
      %p38 = scmp.ne.s32.totalorder %s24, %s25
      %p39 = scmp.eq.s32.totalorder %s17, 3
      %p40 = por %p38, %p39
      %p42 = scmp.ne.s32.totalorder %s25, %s41
      %p43 = scmp.eq.s32.totalorder %s17, 0
      %p44 = por %p42, %p43
      %s46 = sadd.s32 %s45, 1
      %p49 = scmp.eq.s32.totalorder %s11, 3
      %p50 = scmp.ne.s32.totalorder %s45, %s47
      %p51 = scmp.eq.s32.totalorder %s11, 0
      %p52 = por %p50, %p51
      %p53 = scmp.ne.s32.totalorder %s45, %s47
      %p54 = scmp.eq.s32.totalorder %s16, 3
      %p55 = por %p53, %p54
      %p56 = scmp.ne.s32.totalorder %s47, %s48
      %p57 = scmp.eq.s32.totalorder %s16, 0
      %p58 = por %p56, %p57
      %p59 = scmp.ne.s32.totalorder %s47, %s48
      %p60 = scmp.eq.s32.totalorder %s17, 3
      %p61 = por %p59, %p60
      %p63 = scmp.ne.s32.totalorder %s48, %s62
      %p64 = scmp.eq.s32.totalorder %s17, 0
      %p65 = por %p63, %p64
      %s66 = ssub.s32 %s11, %s18
      %p67 = scmp.eq.s32.totalorder %s66, 0
      %s69 = sadd.s32 %s68, 1
      %s70 = scalar_select %p67, %s68, %s69
      %p73 = pneg %p67
      %p74 = scmp.eq.s32.totalorder %s11, 3
      %p75 = por %p73, %p74
      %p76 = scmp.ne.s32.totalorder %s68, %s71
      %p77 = scmp.eq.s32.totalorder %s11, 0
      %p78 = por %p76, %p77
      %p79 = scmp.ne.s32.totalorder %s68, %s71
      %p80 = scmp.eq.s32.totalorder %s16, 3
      %p81 = por %p79, %p80
      %p82 = scmp.ne.s32.totalorder %s71, %s72
      %p83 = scmp.eq.s32.totalorder %s16, 0
      %p84 = por %p82, %p83
      %p85 = scmp.ne.s32.totalorder %s71, %s72
      %p86 = scmp.eq.s32.totalorder %s17, 3
      %p87 = por %p85, %p86
      %p89 = scmp.ne.s32.totalorder %s72, %s88
      %p90 = scmp.eq.s32.totalorder %s17, 0
      %p91 = por %p89, %p90
      %p92 = scmp.le.s32.totalorder 1, %s11
      %p93 = scmp.lt.s32.totalorder %s11, 5
      %p94 = pnand %p92, %p93
      %p95 = pneg %p94
      // Predicated region
      $region9: #{tpu_custom_call.1} parent=5 // pred_check
        _
      $region10: #{tpu_custom_call.1} parent=5 // pred_check_branch
        %97 = sbr.rel (%p94) target = $region12
      $region11: #{tpu_custom_call.1} parent=5 // pred_region
        %s98 = ssub.s32 %s11, 1
        // Predicated region
        $region13: #{tpu_custom_call.1} parent=11 // pred_check
          %p99 = pneg %p58
        $region14: #{tpu_custom_call.1} parent=11 // pred_check_branch
          %101 = sbr.rel (%p99) target = $region16
        $region15: #{tpu_custom_call.1} parent=11 // pred_region
          _
        $region16: #{tpu_custom_call.1} parent=11 // pred_fallthru
          _
      $region12: #{tpu_custom_call.1} parent=5 // pred_fallthru
        _
      %p102 = scmp.lt.s32.totalorder %s11, 4
      // Predicated region
      $region17: #{tpu_custom_call.1} parent=5 // pred_check
        %p103 = pneg %p102
      $region18: #{tpu_custom_call.1} parent=5 // pred_check_branch
        %105 = sbr.rel (%p103) target = $region20
      $region19: #{tpu_custom_call.1} parent=5 // pred_region
        // Predicated region
        $region21: #{tpu_custom_call.1} parent=19 // pred_check
          %p106 = pneg %p31
        $region22: #{tpu_custom_call.1} parent=19 // pred_check_branch
          %108 = sbr.rel (%p106) target = $region24
        $region23: #{tpu_custom_call.1} parent=19 // pred_region
          %s109 = sand.u32 %s21, 1
          %s110 = scalar_lea.sflag [#allocation3], %s109
          %s111 = sand.u32 %s21, 1
          %s112 = smul.addr %s111, 8
          %s113 = scalar_lea.vmem [#allocation2], %s112
          %s115 = ssub.s32 128, 128
          %116 = vsyncadd %s110, %s115
          %s117 = smul.addr %s11, 128
          %s118 = scalar_lea.hbm %s0, %s117
          %s120 = sshll.u32 %s113, 4
          %s121 = int_to_ptr.vmem [resolvable:$true] %s120
          %123 = dma.hbm_to_vmem [thread:$0]  %s118, 128, %s121, %s110
        $region24: #{tpu_custom_call.1} parent=19 // pred_fallthru
          _
      $region20: #{tpu_custom_call.1} parent=5 // pred_fallthru
        _
      %p124 = scmp.le.s32.totalorder 1, %s11
      %p125 = scmp.lt.s32.totalorder %s11, 5
      %p126 = pnand %p124, %p125
      %p127 = pneg %p126
      // Predicated region
      $region25: #{tpu_custom_call.1} parent=5 // pred_check
        _
      $region26: #{tpu_custom_call.1} parent=5 // pred_check_branch
        %129 = sbr.rel (%p126) target = $region28
      $region27: #{tpu_custom_call.1} parent=5 // pred_region
        %s130 = ssub.s32 %s11, 1
        %s131 = sand.u32 %s24, 1
        %s132 = scalar_lea.sflag [#allocation3], %s131
        %s133 = sand.u32 %s24, 1
        %s134 = smul.addr %s133, 8
        %s135 = scalar_lea.vmem [#allocation2], %s134
        // Predicated region
        $region29: #{tpu_custom_call.1} parent=27 // pred_check
          %p136 = pneg %p37
        $region30: #{tpu_custom_call.1} parent=27 // pred_check_branch
          %138 = sbr.rel (%p136) target = $region32
        $region31: #{tpu_custom_call.1} parent=27 // pred_region
          %139 = dma.done %s132, 128
        $region32: #{tpu_custom_call.1} parent=27 // pred_fallthru
          _
        %s140 = sand.u32 %s24, 1
        %s141 = scalar_lea.sflag [#allocation3], %s140
        %s142 = sand.u32 %s24, 1
        %s143 = smul.addr %s142, 8
        %s144 = scalar_lea.vmem [#allocation2], %s143
        %p145 = pneg %p37
        %p146 = pneg %p34
        %p147 = pneg %p58
        %p148 = pneg %p55
        %p149 = pneg %p84
        %p150 = pneg %p81
        %p151 = scmp.lt.s32.totalorder %s16, 3
        %s152 = scalar_select %p151, %s16, 3
        %s153 = smul.addr %s152, 8
        %s154 = scalar_lea.vmem %s2, %s153
        %p155 = scmp.lt.s32.totalorder %s16, 3
        %s156 = scalar_select %p155, %s16, 3
        %s157 = smul.addr %s156, 8
        %s158 = scalar_lea.vmem %s2, %s157
        %v159 = vld [vmem:[%s135] sm:$0xff]
        %v160 = vld [vmem:[%s1] sm:$0x1]
        %v162 = vlaneseq
        %v163 = vshrl.u32 %v162, 7
        %v164 = vsub.s32 0, %v163
        %v165 = vrot.slane %v160, %v164
        %166 = vrot.lane.b32.xlu0 %v165, 8
        %v167 = vpop.permute.xlu0 %166
        %v169 = vmul.f32 %v159, %v167
        %171 = vrot.lane.b32.xlu0 %v169, 120
        %v172 = vpop.permute.xlu0 %171
        %vm174 = vcmask 130048
        %175 = vst.msk [vmem:[%s158] sm:$0xff] %vm174, %v172
        %p176 = scmp.lt.s32.totalorder %s16, 3
        %s177 = scalar_select %p176, %s16, 3
        %s178 = smul.addr %s177, 8
        %s179 = scalar_lea.vmem %s2, %s178
        // Predicated region
        $region33: #{tpu_custom_call.1} parent=27 // pred_check
          %p180 = pneg %p81
        $region34: #{tpu_custom_call.1} parent=27 // pred_check_branch
          %182 = sbr.rel (%p180) target = $region36
        $region35: #{tpu_custom_call.1} parent=27 // pred_region
          _
        $region36: #{tpu_custom_call.1} parent=27 // pred_fallthru
          _
      $region28: #{tpu_custom_call.1} parent=5 // pred_fallthru
        _
      %p183 = scmp.le.s32.totalorder 2, %s11
      // Predicated region
      $region37: #{tpu_custom_call.1} parent=5 // pred_check
        %p184 = pneg %p183
      $region38: #{tpu_custom_call.1} parent=5 // pred_check_branch
        %186 = sbr.rel (%p184) target = $region40
      $region39: #{tpu_custom_call.1} parent=5 // pred_region
        %s187 = ssub.s32 %s11, 2
        // Predicated region
        $region41: #{tpu_custom_call.1} parent=39 // pred_check
          %p188 = pneg %p87
        $region42: #{tpu_custom_call.1} parent=39 // pred_check_branch
          %190 = sbr.rel (%p188) target = $region44
        $region43: #{tpu_custom_call.1} parent=39 // pred_region
          %p191 = scmp.lt.s32.totalorder %s17, 3
          %s192 = scalar_select %p191, %s17, 3
          %s193 = smul.addr %s192, 8
          %s194 = scalar_lea.vmem %s2, %s193
        $region44: #{tpu_custom_call.1} parent=39 // pred_fallthru
          _
      $region40: #{tpu_custom_call.1} parent=5 // pred_fallthru
        _
    $region6: #{tpu_custom_call.1} parent=1 // loop_footer
      %s15 = sadd.s32 1, %s11
    $region7: #{tpu_custom_call.1} parent=1 // loop_footer_branch
      %10 = sbr.rel target = $region3
    $region8: #{tpu_custom_call.1} parent=1 // loop_exit
      _
    %195 = vsyncpa [#allocation3], 1
    %s196 = scalar_lea.sflag [#allocation3], 1
    %197 = vsyncpa %s196, 1

</llo_original>
